<compile_context>
chip_gen: v7x
topology: tpu7x:2x2x1
jax: 0.10.0
libtpu: 0.0.40
codegen_flags: <defaults>
</compile_context>

<pallas_src>
import jax
import jax.numpy as jnp
from jax.experimental import pallas as pl
from jax.experimental.pallas import tpu as pltpu

_INV_SQRT2 = 0.7071067811865476


# --------------------------------------------------------------------------- #
# Kernels
# --------------------------------------------------------------------------- #
def _make_ffn_kernel(use_acc: bool, approximate_gelu: bool):
    def _gelu(h):
        if approximate_gelu:
            # tanh approximation: transcendental goes to the (otherwise idle)
            # EUP slot -- useful on v5e when the erf polynomial binds the VPU.
            return jax.nn.gelu(h, approximate=True)
        # exact GELU (erf formulation, matches torch.nn.GELU default)
        return 0.5 * h * (1.0 + jax.lax.erf(h * _INV_SQRT2))

    if use_acc:
        # Non-f32 output: keep a resident f32 accumulator scratch.
        def kernel(x_ref, w1_ref, b1_ref, w2_ref, b2_ref, o_ref, acc_ref):
            k = pl.program_id(1)

            @pl.when(k == 0)
            def _():
                acc_ref[...] = jnp.zeros_like(acc_ref)

            h = jnp.dot(x_ref[...], w1_ref[...],
                        preferred_element_type=jnp.float32)
            h = _gelu(h + b1_ref[...].astype(jnp.float32))
            acc_ref[...] += jnp.dot(h.astype(w2_ref.dtype), w2_ref[...],
                                    preferred_element_type=jnp.float32)

            @pl.when(k == pl.num_programs(1) - 1)
            def _():
                o_ref[...] = (acc_ref[...] +
                              b2_ref[...].astype(jnp.float32)).astype(o_ref.dtype)
    else:
        # f32 output: accumulate directly into the (VMEM-resident) output block
        # and drop the scratch accumulator entirely (saves tm*H*4 B of VMEM).
        def kernel(x_ref, w1_ref, b1_ref, w2_ref, b2_ref, o_ref):
            k = pl.program_id(1)

            @pl.when(k == 0)
            def _():
                o_ref[...] = jnp.zeros_like(o_ref)

            h = jnp.dot(x_ref[...], w1_ref[...],
                        preferred_element_type=jnp.float32)
            h = _gelu(h + b1_ref[...].astype(jnp.float32))
            o_ref[...] += jnp.dot(h.astype(w2_ref.dtype), w2_ref[...],
                                  preferred_element_type=jnp.float32)

            @pl.when(k == pl.num_programs(1) - 1)
            def _():
                o_ref[...] += b2_ref[...].astype(jnp.float32)

    return kernel


# --------------------------------------------------------------------------- #
# Tile / VMEM selection helpers
# --------------------------------------------------------------------------- #
def _round_up(x, m):
    return ((x + m - 1) // m) * m


def _sublane_align(dtype):
    size = jnp.dtype(dtype).itemsize
    if size >= 4:
        return 8
    if size == 2:
        return 16
    return 32


def _vmem_capacity_bytes():
    try:
        return int(pltpu.get_tpu_info().vmem_capacity_bytes)
    except Exception:
        return 64 * 1024 * 1024   # conservative (v7x per-TensorCore)


def _block_vmem_bytes(tm, tf, hidden, in_bytes, w_bytes, out_bytes, use_acc):
    """Estimate VMEM use assuming double-buffered BlockSpec I/O."""
    x_blk = 2 * tm * hidden * in_bytes
    w1_blk = 2 * hidden * tf * w_bytes
    b1_blk = 2 * tf * 4
    w2_blk = 2 * tf * hidden * w_bytes
    b2_blk = 2 * hidden * 4
    o_blk = 2 * tm * hidden * out_bytes
    acc = tm * hidden * 4 if use_acc else 0
    return x_blk + w1_blk + b1_blk + w2_blk + b2_blk + o_blk + acc


def _select_config(m, hidden, ffn, in_bytes, w_bytes, out_bytes, use_acc,
                   budget, m_align):
    """Return (tm, tf, ffn_padded, weights_resident)."""
    m_req = _round_up(m, m_align)

    tm_cands = [1024, 512, 256, 128, 64, 32, 16, 8]
    tm_cands = sorted({min(t, m_req) for t in tm_cands
                       if min(t, m_req) >= m_align}, reverse=True)
    if not tm_cands:
        tm_cands = [m_req]

    # 1) Weight-resident path: F collapsed to a single reduction step, so
    #    w1/w2 are DMA'd from HBM exactly once regardless of M tile count.
    for tm in tm_cands:
        if _block_vmem_bytes(tm, ffn, hidden, in_bytes, w_bytes,
                             out_bytes, use_acc) <= budget:
            return tm, ffn, ffn, True

    # 2) Tiled-F path: maximize tm first (arithmetic intensity ~ tm FLOP per
    #    weight byte), then tf; pad F to a multiple of the chosen tile.
    tf_cands = [2048, 1024, 512, 256, 128]
    for tm in tm_cands:
        for tf in tf_cands:
            if tf > _round_up(ffn, 128):
                continue
            if _block_vmem_bytes(tm, tf, hidden, in_bytes, w_bytes,
                                 out_bytes, use_acc) <= budget:
                return tm, tf, _round_up(ffn, tf), False

    # 3) Last resort: smallest tiles.
    return tm_cands[-1], 128, _round_up(ffn, 128), False


# --------------------------------------------------------------------------- #
# Wrapper
# --------------------------------------------------------------------------- #
def feed_forward_network(x, w1, b1, w2, b2, *,
                         compute_dtype=jnp.bfloat16,
                         approximate_gelu=False,
                         vmem_limit_bytes=None):
    """FFN:  y = GELU(x @ w1 + b1) @ w2 + b2.

    x: [batch, seq, hidden]; w1: [hidden, ffn]; b1: [ffn];
    w2: [ffn, hidden]; b2: [hidden].  Returns [batch, seq, hidden] in x.dtype.

    compute_dtype: dtype of the MXU operands (accumulation is always f32).
    Default bf16 (native MXU fast path); pass jnp.float32 or None for exact
    arithmetic in the inputs' own dtype.
    """
    batch, seq, hidden = x.shape
    ffn = w1.shape[1]
    m = batch * seq
    out_dtype = x.dtype

    if compute_dtype is None:
        compute_dtype = x.dtype

    # --- operand dtypes (bf16 MXU fast path; biases stay f32) ---------------
    xc = x.astype(compute_dtype).reshape(m, hidden)
    w1c = w1.astype(compute_dtype)
    w2c = w2.astype(compute_dtype)
    b1f = b1.astype(jnp.float32).reshape(1, ffn)
    b2f = b2.astype(jnp.float32).reshape(1, hidden)

    use_acc = jnp.dtype(out_dtype) != jnp.dtype(jnp.float32)
    in_bytes = jnp.dtype(compute_dtype).itemsize
    w_bytes = in_bytes
    out_bytes = jnp.dtype(out_dtype).itemsize
    m_align = _sublane_align(compute_dtype)

    # --- generation-aware VMEM budget ---------------------------------------
    cap = _vmem_capacity_bytes()
    if vmem_limit_bytes is None:
        vmem_limit_bytes = min(cap - 10 * 1024 * 1024, 100 * 1024 * 1024)
    budget = vmem_limit_bytes - 6 * 1024 * 1024   # headroom for Mosaic scratch

    tm, tf, ffn_pad, weights_resident = _select_config(
        m, hidden, ffn, in_bytes, w_bytes, out_bytes, use_acc, budget, m_align)

    m_pad = _round_up(m, tm)
    if weights_resident and m_pad // tm < 2:
        # v7x has 2 TensorCores per chip; give the "parallel" M axis >= 2 tiles
        # when the weights are VMEM-resident (free: weights still DMA'd once).
        tm_half = _round_up(-(-m // 2), m_align)
        if m_align <= tm_half < tm:
            tm = tm_half
            m_pad = _round_up(m, tm)

    # --- padding (M to the tile; F to the tile when F is tiled) -------------
    if m_pad != m:
        xc = jnp.pad(xc, ((0, m_pad - m), (0, 0)))
    if ffn_pad != ffn:
        # zero-padding F is a mathematical no-op: gelu(0 + 0) = 0, 0 @ w2 = 0
        w1c = jnp.pad(w1c, ((0, 0), (0, ffn_pad - ffn)))
        b1f = jnp.pad(b1f, ((0, 0), (0, ffn_pad - ffn)))
        w2c = jnp.pad(w2c, ((0, ffn_pad - ffn), (0, 0)))

    grid = (m_pad // tm, ffn_pad // tf)        # reduction axis (F) last

    kernel = _make_ffn_kernel(use_acc, approximate_gelu)
    scratch = [pltpu.VMEM((tm, hidden), jnp.float32)] if use_acc else []

    weight_bytes = (hidden * ffn_pad + ffn_pad * hidden) * w_bytes \
                   + (ffn_pad + hidden) * 4
    weight_traffic = weight_bytes if weights_resident \
        else weight_bytes * (m_pad // tm)
    cost = pl.CostEstimate(
        flops=4 * m_pad * hidden * ffn_pad,
        transcendentals=m_pad * ffn_pad,
        bytes_accessed=m_pad * hidden * (in_bytes + out_bytes) + weight_traffic)

    out2d = pl.pallas_call(
        kernel,
        out_shape=jax.ShapeDtypeStruct((m_pad, hidden), out_dtype),
        grid_spec=pltpu.PrefetchScalarGridSpec(
            num_scalar_prefetch=0,
            grid=grid,
            in_specs=[
                pl.BlockSpec((tm, hidden), lambda i, k: (i, 0)),   # x tile
                pl.BlockSpec((hidden, tf), lambda i, k: (0, k)),   # w1 tile
                pl.BlockSpec((1, tf),      lambda i, k: (0, k)),   # b1 tile
                pl.BlockSpec((tf, hidden), lambda i, k: (k, 0)),   # w2 tile
                pl.BlockSpec((1, hidden),  lambda i, k: (0, 0)),   # b2
            ],
            out_specs=pl.BlockSpec((tm, hidden), lambda i, k: (i, 0)),
            scratch_shapes=scratch,
        ),
        compiler_params=pltpu.CompilerParams(
            dimension_semantics=("parallel", "arbitrary"),
            vmem_limit_bytes=vmem_limit_bytes,
        ),
        cost_estimate=cost,
    )(xc, w1c, b1f, w2c, b2f)

    if m_pad != m:
        out2d = out2d[:m]
    return out2d.reshape(batch, seq, hidden)


def init_params(key, hidden_size, ffn_size, dtype=jnp.float32):
    """Deterministic init mirroring nn.Linear's uniform(-1/sqrt(fan_in), ...)."""
    k1, k2, k3, k4 = jax.random.split(key, 4)
    lim1 = 1.0 / (hidden_size ** 0.5)
    lim2 = 1.0 / (ffn_size ** 0.5)
    # stored as [in, out] so the kernel computes x @ W + b
    w1 = jax.random.uniform(k1, (hidden_size, ffn_size), dtype, -lim1, lim1)
    b1 = jax.random.uniform(k2, (ffn_size,), dtype, -lim1, lim1)
    w2 = jax.random.uniform(k3, (ffn_size, hidden_size), dtype, -lim2, lim2)
    b2 = jax.random.uniform(k4, (hidden_size,), dtype, -lim2, lim2)
    return w1, b1, w2, b2


if __name__ == "__main__":
    key = jax.random.PRNGKey(0)
    batch, seq, hidden_size, ffn_size = 2, 8, 32, 64

    kx, kp = jax.random.split(key)
    x = jax.random.normal(kx, (batch, seq, hidden_size), dtype=jnp.float32)
    w1, b1, w2, b2 = init_params(kp, hidden_size, ffn_size)

    # Pure-JAX reference (exact erf GELU, matches torch.nn.GELU default).
    h_ref = x.reshape(-1, hidden_size) @ w1 + b1
    h_ref = 0.5 * h_ref * (1.0 + jax.lax.erf(h_ref / jnp.sqrt(2.0)))
    ref = (h_ref @ w2 + b2).reshape(batch, seq, hidden_size)

    # 1) Exact f32 compute path (matches reference tightly).
    out_f32 = feed_forward_network(x, w1, b1, w2, b2, compute_dtype=jnp.float32)
    jax.block_until_ready(out_f32)
    assert jnp.allclose(out_f32, ref, atol=1e-5, rtol=1e-5)

    # 2) Default bf16 MXU fast path (f32 accumulation), f32 output.
    out_bf16 = feed_forward_network(x, w1, b1, w2, b2)
    jax.block_until_ready(out_bf16)
    assert jnp.allclose(out_bf16, ref, atol=5e-2, rtol=5e-2)

    # 3) bf16 activations end-to-end (exercises the scratch-accumulator path).
    out_bf16x = feed_forward_network(x.astype(jnp.bfloat16), w1, b1, w2, b2)
    jax.block_until_ready(out_bf16x)
    assert jnp.allclose(out_bf16x.astype(jnp.float32), ref, atol=1e-1, rtol=5e-2)

    print("KERNEL_OK")
</pallas_src>

<mosaic_0001>
module attributes {stable_mosaic.version = 11 : i64} {
  func.func @kernel(%arg0: i32, %arg1: i32, %arg2: memref<8x32xf32, #tpu.memory_space<vmem>>, %arg3: memref<32x64xf32, #tpu.memory_space<vmem>>, %arg4: memref<1x64xf32, #tpu.memory_space<vmem>>, %arg5: memref<64x32xf32, #tpu.memory_space<vmem>>, %arg6: memref<1x32xf32, #tpu.memory_space<vmem>>, %arg7: memref<8x32xf32, #tpu.memory_space<vmem>>) attributes {dimension_semantics = [#tpu.dimension_semantics<parallel>, #tpu.dimension_semantics<arbitrary>], iteration_bounds = array<i64: 2, 1>, scalar_prefetch = 0 : i64, scratch_operands = 0 : i64, tpu.core_type = #tpu.core_type<tc>, window_params = [{transform_indices = @transform_0, window_bounds = array<i64: 8, 32>}, {transform_indices = @transform_1, window_bounds = array<i64: 32, 64>}, {transform_indices = @transform_2, window_bounds = array<i64: 1, 64>}, {transform_indices = @transform_3, window_bounds = array<i64: 64, 32>}, {pipeline_mode = #tpu.pipeline_mode<synchronous>, transform_indices = @transform_4, window_bounds = array<i64: 1, 32>}, {transform_indices = @transform_5, window_bounds = array<i64: 8, 32>}]} {
    %c0_i32 = arith.constant 0 : i32
    %0 = arith.cmpi eq, %arg1, %c0_i32 : i32
    %1 = arith.extui %0 : i1 to i32
    %c0_i32_0 = arith.constant 0 : i32
    %2 = arith.cmpi ne, %1, %c0_i32_0 : i32
    scf.if %2 {
      %cst_18 = arith.constant 0.000000e+00 : f32
      %25 = vector.broadcast %cst_18 : f32 to vector<8x32xf32>
      %c0_19 = arith.constant 0 : index
      %c0_20 = arith.constant 0 : index
      %26 = vector.load %arg7[%c0_19, %c0_20] : memref<8x32xf32, #tpu.memory_space<vmem>>, vector<8x32xf32>
      tpu.vector_store %arg7[%c0_19, %c0_20], %25 {strides = array<i32>} : memref<8x32xf32, #tpu.memory_space<vmem>>, vector<8x32xf32>,
    } else {
    }
    %c0 = arith.constant 0 : index
    %c0_1 = arith.constant 0 : index
    %3 = vector.load %arg2[%c0, %c0_1] : memref<8x32xf32, #tpu.memory_space<vmem>>, vector<8x32xf32>
    %c0_2 = arith.constant 0 : index
    %c0_3 = arith.constant 0 : index
    %4 = vector.load %arg3[%c0_2, %c0_3] : memref<32x64xf32, #tpu.memory_space<vmem>>, vector<32x64xf32>
    %cst = arith.constant dense<0.000000e+00> : vector<8x64xf32>
    %5 = tpu.matmul %3, %4, %cst {dimension_numbers = #tpu.dot_dimension_numbers<[1], [0], [0], [1], [0, 0, 1, 1], [], []>} : vector<8x32xf32>, vector<32x64xf32>, vector<8x64xf32> -> vector<8x64xf32>
    %c0_4 = arith.constant 0 : index
    %c0_5 = arith.constant 0 : index
    %6 = vector.load %arg4[%c0_4, %c0_5] : memref<1x64xf32, #tpu.memory_space<vmem>>, vector<1x64xf32>
    %7 = vector.broadcast %6 : vector<1x64xf32> to vector<8x64xf32>
    %8 = arith.addf %5, %7 : vector<8x64xf32>
    %cst_6 = arith.constant 5.000000e-01 : f32
    %9 = vector.broadcast %cst_6 : f32 to vector<8x64xf32>
    %10 = arith.mulf %9, %8 : vector<8x64xf32>
    %cst_7 = arith.constant 0.707106769 : f32
    %11 = vector.broadcast %cst_7 : f32 to vector<8x64xf32>
    %12 = arith.mulf %8, %11 : vector<8x64xf32>
    %13 = math.erf %12 : vector<8x64xf32>
    %cst_8 = arith.constant 1.000000e+00 : f32
    %14 = vector.broadcast %cst_8 : f32 to vector<8x64xf32>
    %15 = arith.addf %14, %13 : vector<8x64xf32>
    %16 = arith.mulf %10, %15 : vector<8x64xf32>
    %c0_9 = arith.constant 0 : index
    %c0_10 = arith.constant 0 : index
    %17 = vector.load %arg7[%c0_9, %c0_10] : memref<8x32xf32, #tpu.memory_space<vmem>>, vector<8x32xf32>
    %c0_11 = arith.constant 0 : index
    %c0_12 = arith.constant 0 : index
    %18 = vector.load %arg5[%c0_11, %c0_12] : memref<64x32xf32, #tpu.memory_space<vmem>>, vector<64x32xf32>
    %cst_13 = arith.constant dense<0.000000e+00> : vector<8x32xf32>
    %19 = tpu.matmul %16, %18, %cst_13 {dimension_numbers = #tpu.dot_dimension_numbers<[1], [0], [0], [1], [0, 0, 1, 1], [], []>} : vector<8x64xf32>, vector<64x32xf32>, vector<8x32xf32> -> vector<8x32xf32>
    %20 = arith.addf %17, %19 : vector<8x32xf32>
    %c0_14 = arith.constant 0 : index
    %c0_15 = arith.constant 0 : index
    %21 = vector.load %arg7[%c0_14, %c0_15] : memref<8x32xf32, #tpu.memory_space<vmem>>, vector<8x32xf32>
    tpu.vector_store %arg7[%c0_14, %c0_15], %20 {strides = array<i32>} : memref<8x32xf32, #tpu.memory_space<vmem>>, vector<8x32xf32>,
    %c0_i32_16 = arith.constant 0 : i32
    %22 = arith.cmpi eq, %arg1, %c0_i32_16 : i32
    %23 = arith.extui %22 : i1 to i32
    %c0_i32_17 = arith.constant 0 : i32
    %24 = arith.cmpi ne, %23, %c0_i32_17 : i32
    scf.if %24 {
      %c0_18 = arith.constant 0 : index
      %c0_19 = arith.constant 0 : index
      %25 = vector.load %arg7[%c0_18, %c0_19] : memref<8x32xf32, #tpu.memory_space<vmem>>, vector<8x32xf32>
      %c0_20 = arith.constant 0 : index
      %c0_21 = arith.constant 0 : index
      %26 = vector.load %arg6[%c0_20, %c0_21] : memref<1x32xf32, #tpu.memory_space<vmem>>, vector<1x32xf32>
      %27 = vector.broadcast %26 : vector<1x32xf32> to vector<8x32xf32>
      %28 = arith.addf %25, %27 : vector<8x32xf32>
      %c0_22 = arith.constant 0 : index
      %c0_23 = arith.constant 0 : index
      %29 = vector.load %arg7[%c0_22, %c0_23] : memref<8x32xf32, #tpu.memory_space<vmem>>, vector<8x32xf32>
      tpu.vector_store %arg7[%c0_22, %c0_23], %28 {strides = array<i32>} : memref<8x32xf32, #tpu.memory_space<vmem>>, vector<8x32xf32>,
    } else {
    }
    return
  }
  func.func @transform_0(%arg0: i32, %arg1: i32) -> (i32, i32) {
    %c0_i32 = arith.constant 0 : i32
    %c0_i32_0 = arith.constant 0 : i32
    return %arg0, %c0_i32 : i32, i32
  }
  func.func @transform_1(%arg0: i32, %arg1: i32) -> (i32, i32) {
    %c0_i32 = arith.constant 0 : i32
    %c0_i32_0 = arith.constant 0 : i32
    return %c0_i32, %arg1 : i32, i32
  }
  func.func @transform_2(%arg0: i32, %arg1: i32) -> (i32, i32) {
    %c0_i32 = arith.constant 0 : i32
    %c0_i32_0 = arith.constant 0 : i32
    return %c0_i32, %arg1 : i32, i32
  }
  func.func @transform_3(%arg0: i32, %arg1: i32) -> (i32, i32) {
    %c0_i32 = arith.constant 0 : i32
    %c0_i32_0 = arith.constant 0 : i32
    return %arg1, %c0_i32 : i32, i32
  }
  func.func @transform_4(%arg0: i32, %arg1: i32) -> (i32, i32) {
    %c0_i32 = arith.constant 0 : i32
    %c0_i32_0 = arith.constant 0 : i32
    %c0_i32_1 = arith.constant 0 : i32
    return %c0_i32, %c0_i32_0 : i32, i32
  }
  func.func @transform_5(%arg0: i32, %arg1: i32) -> (i32, i32) {
    %c0_i32 = arith.constant 0 : i32
    %c0_i32_0 = arith.constant 0 : i32
    return %arg0, %c0_i32 : i32, i32
  }
}

</mosaic_0001>

<llo_original>
// kernel: tpu_custom_call.1
$region0: #{tpu_custom_call.1}
  #allocation0 [shape = 'u32[]', space=smem, size = 0x4, offset = 0x4, fixed_abs, tag = 'smem constant byte address 0x4 - core index']
  #allocation1 [shape = 'u32[144,128]{1,0:T(1,128)}', space=vmem, size = 0x12000, scoped, tag = 'internal scratch']
  %s0 = inlined_call_operand.vmem [shape: f32[16,32], index: 0, kind: input, shape index: {}]
  %s1 = inlined_call_operand.vmem [shape: f32[32,64], index: 1, kind: input, shape index: {}]
  %s2 = inlined_call_operand.vmem [shape: f32[1,64], index: 2, kind: input, shape index: {}]
  %s3 = inlined_call_operand.vmem [shape: f32[64,32], index: 3, kind: input, shape index: {}]
  %s4 = inlined_call_operand.vmem [shape: f32[1,32], index: 4, kind: input, shape index: {}]
  %s5 = inlined_call_operand.hbm [shape: f32[16,32], index: 5, kind: output, shape index: {}]
  %s6 = sld [smem:[#allocation0]]
  $region61: #{tpu_custom_call.1} parent=0
    _
  %s8 = ssub.s32 1, %s6
  %s9 = scalar_select 0, %s8, %s6
  $region1: #{tpu_custom_call.1} parent=0
    #allocation2 [shape = 'u8[8192]{0}', space=vmem, size = 0x2000, scoped, tag = 'output window, operand 0']
    #allocation3 [shape = 's32[2]{0}', space=sflag, size = 0x8, scoped, tag = 'scoped memory for tpu_custom_call.1']
    %10 = vsyncpa [#allocation3], 0
    %s11 = scalar_lea.sflag [#allocation3], 1
    %12 = vsyncpa %s11, 0
    loop: start=0, step=1, limit=4
    $region2: #{tpu_custom_call.1} parent=1 // loop_pre_header
      _
    $region3: #{tpu_custom_call.1} parent=1 // loop_header
      %s14 = sphi 0, %s18
      %p15 = scmp.ge.s32.totalorder %s14, 4
      %s21 = sphi 0, %s33
      %s22 = sphi 0, %s29
      %s23 = sphi 0, %s21
      %s24 = sphi 0, %s22
      %s25 = sphi 0, %s23
      %s26 = sphi 0, %s24
      %s36 = sphi 0, %s38
      %s39 = sphi 0, %s36
      %s40 = sphi 0, %s39
      %s56 = sphi 0, %s40
      %s62 = sphi 0, %s64
      %s65 = sphi 0, %s62
      %s66 = sphi 0, %s65
      %s82 = sphi 0, %s66
      %s88 = sphi 0, %s90
      %s91 = sphi 0, %s88
      %s92 = sphi 0, %s91
      %s108 = sphi 0, %s92
      %s114 = sphi 0, %s116
      %s117 = sphi 0, %s114
      %s118 = sphi 0, %s117
      %s134 = sphi 0, %s118
      %s138 = sphi 0, %s138
      %s140 = sphi 0, %s138
      %s141 = sphi 0, %s140
      %s155 = sphi 0, %s141
      %s161 = sphi 0, %s163
      %s164 = sphi 0, %s161
      %s165 = sphi 0, %s164
      %s181 = sphi 0, %s165
    $region4: #{tpu_custom_call.1} parent=1 // loop_header_branch
      %17 = sbr.rel (%p15) target = $region8
    $region5: #{tpu_custom_call.1} parent=1 // loop_body
      %s19 = ssub.s32 %s14, 1
      %s20 = ssub.s32 %s14, 2
      %s27 = sadd.s32 1, %s22
      %p28 = scmp.ge.s32.totalorder %s27, 1
      %s29 = scalar_select %p28, 0, %s27
      %s30 = sadd.s32 1, %s21
      %s31 = scalar_select %p28, %s30, %s21
      %p32 = scmp.ge.s32.totalorder %s31, 2
      %s33 = scalar_select %p32, 0, %s31
      %s34 = ssub.s32 %s21, %s33
      %p35 = scmp.eq.s32.totalorder %s34, 0
      %s37 = sadd.s32 %s36, 1
      %s38 = scalar_select %p35, %s36, %s37
      %p41 = pneg %p35
      %p42 = scmp.eq.s32.totalorder %s14, 1
      %p43 = por %p41, %p42
      %p44 = scmp.ne.s32.totalorder %s36, %s39
      %p45 = scmp.eq.s32.totalorder %s14, 0
      %p46 = por %p44, %p45
      %p47 = scmp.ne.s32.totalorder %s36, %s39
      %p48 = scmp.eq.s32.totalorder %s19, 1
      %p49 = por %p47, %p48
      %p50 = scmp.ne.s32.totalorder %s39, %s40
      %p51 = scmp.eq.s32.totalorder %s19, 0
      %p52 = por %p50, %p51
      %p53 = scmp.ne.s32.totalorder %s39, %s40
      %p54 = scmp.eq.s32.totalorder %s20, 1
      %p55 = por %p53, %p54
      %p57 = scmp.ne.s32.totalorder %s40, %s56
      %p58 = scmp.eq.s32.totalorder %s20, 0
      %p59 = por %p57, %p58
      %s60 = ssub.s32 %s22, %s29
      %p61 = scmp.eq.s32.totalorder %s60, 0
      %s63 = sadd.s32 %s62, 1
      %s64 = scalar_select %p61, %s62, %s63
      %p67 = pneg %p61
      %p68 = scmp.eq.s32.totalorder %s14, 1
      %p69 = por %p67, %p68
      %p70 = scmp.ne.s32.totalorder %s62, %s65
      %p71 = scmp.eq.s32.totalorder %s14, 0
      %p72 = por %p70, %p71
      %p73 = scmp.ne.s32.totalorder %s62, %s65
      %p74 = scmp.eq.s32.totalorder %s19, 1
      %p75 = por %p73, %p74
      %p76 = scmp.ne.s32.totalorder %s65, %s66
      %p77 = scmp.eq.s32.totalorder %s19, 0
      %p78 = por %p76, %p77
      %p79 = scmp.ne.s32.totalorder %s65, %s66
      %p80 = scmp.eq.s32.totalorder %s20, 1
      %p81 = por %p79, %p80
      %p83 = scmp.ne.s32.totalorder %s66, %s82
      %p84 = scmp.eq.s32.totalorder %s20, 0
      %p85 = por %p83, %p84
      %s86 = ssub.s32 %s22, %s29
      %p87 = scmp.eq.s32.totalorder %s86, 0
      %s89 = sadd.s32 %s88, 1
      %s90 = scalar_select %p87, %s88, %s89
      %p93 = pneg %p87
      %p94 = scmp.eq.s32.totalorder %s14, 1
      %p95 = por %p93, %p94
      %p96 = scmp.ne.s32.totalorder %s88, %s91
      %p97 = scmp.eq.s32.totalorder %s14, 0
      %p98 = por %p96, %p97
      %p99 = scmp.ne.s32.totalorder %s88, %s91
      %p100 = scmp.eq.s32.totalorder %s19, 1
      %p101 = por %p99, %p100
      %p102 = scmp.ne.s32.totalorder %s91, %s92
      %p103 = scmp.eq.s32.totalorder %s19, 0
      %p104 = por %p102, %p103
      %p105 = scmp.ne.s32.totalorder %s91, %s92
      %p106 = scmp.eq.s32.totalorder %s20, 1
      %p107 = por %p105, %p106
      %p109 = scmp.ne.s32.totalorder %s92, %s108
      %p110 = scmp.eq.s32.totalorder %s20, 0
      %p111 = por %p109, %p110
      %s112 = ssub.s32 %s22, %s29
      %p113 = scmp.eq.s32.totalorder %s112, 0
      %s115 = sadd.s32 %s114, 1
      %s116 = scalar_select %p113, %s114, %s115
      %p119 = pneg %p113
      %p120 = scmp.eq.s32.totalorder %s14, 1
      %p121 = por %p119, %p120
      %p122 = scmp.ne.s32.totalorder %s114, %s117
      %p123 = scmp.eq.s32.totalorder %s14, 0
      %p124 = por %p122, %p123
      %p125 = scmp.ne.s32.totalorder %s114, %s117
      %p126 = scmp.eq.s32.totalorder %s19, 1
      %p127 = por %p125, %p126
      %p128 = scmp.ne.s32.totalorder %s117, %s118
      %p129 = scmp.eq.s32.totalorder %s19, 0
      %p130 = por %p128, %p129
      %p131 = scmp.ne.s32.totalorder %s117, %s118
      %p132 = scmp.eq.s32.totalorder %s20, 1
      %p133 = por %p131, %p132
      %p135 = scmp.ne.s32.totalorder %s118, %s134
      %p136 = scmp.eq.s32.totalorder %s20, 0
      %p137 = por %p135, %p136
      %s139 = sadd.s32 %s138, 1
      %p142 = scmp.eq.s32.totalorder %s14, 1
      %p143 = scmp.ne.s32.totalorder %s138, %s140
      %p144 = scmp.eq.s32.totalorder %s14, 0
      %p145 = por %p143, %p144
      %p146 = scmp.ne.s32.totalorder %s138, %s140
      %p147 = scmp.eq.s32.totalorder %s19, 1
      %p148 = por %p146, %p147
      %p149 = scmp.ne.s32.totalorder %s140, %s141
      %p150 = scmp.eq.s32.totalorder %s19, 0
      %p151 = por %p149, %p150
      %p152 = scmp.ne.s32.totalorder %s140, %s141
      %p153 = scmp.eq.s32.totalorder %s20, 1
      %p154 = por %p152, %p153
      %p156 = scmp.ne.s32.totalorder %s141, %s155
      %p157 = scmp.eq.s32.totalorder %s20, 0
      %p158 = por %p156, %p157
      %s159 = ssub.s32 %s21, %s33
      %p160 = scmp.eq.s32.totalorder %s159, 0
      %s162 = sadd.s32 %s161, 1
      %s163 = scalar_select %p160, %s161, %s162
      %p166 = pneg %p160
      %p167 = scmp.eq.s32.totalorder %s14, 1
      %p168 = por %p166, %p167
      %p169 = scmp.ne.s32.totalorder %s161, %s164
      %p170 = scmp.eq.s32.totalorder %s14, 0
      %p171 = por %p169, %p170
      %p172 = scmp.ne.s32.totalorder %s161, %s164
      %p173 = scmp.eq.s32.totalorder %s19, 1
      %p174 = por %p172, %p173
      %p175 = scmp.ne.s32.totalorder %s164, %s165
      %p176 = scmp.eq.s32.totalorder %s19, 0
      %p177 = por %p175, %p176
      %p178 = scmp.ne.s32.totalorder %s164, %s165
      %p179 = scmp.eq.s32.totalorder %s20, 1
      %p180 = por %p178, %p179
      %p182 = scmp.ne.s32.totalorder %s165, %s181
      %p183 = scmp.eq.s32.totalorder %s20, 0
      %p184 = por %p182, %p183
      %p185 = scmp.le.s32.totalorder 1, %s14
      %p186 = scmp.lt.s32.totalorder %s14, 3
      %p187 = pnand %p185, %p186
      %p188 = pneg %p187
      // Predicated region
      $region9: #{tpu_custom_call.1} parent=5 // pred_check
        _
      $region10: #{tpu_custom_call.1} parent=5 // pred_check_branch
        %190 = sbr.rel (%p187) target = $region12
      $region11: #{tpu_custom_call.1} parent=5 // pred_region
        %s191 = ssub.s32 %s14, 1
        // Predicated region
        $region13: #{tpu_custom_call.1} parent=11 // pred_check
          %p192 = pneg %p78
        $region14: #{tpu_custom_call.1} parent=11 // pred_check_branch
          %194 = sbr.rel (%p192) target = $region16
        $region15: #{tpu_custom_call.1} parent=11 // pred_region
          %p195 = scmp.lt.s32.totalorder %s24, 0
          %s196 = scalar_select %p195, %s24, 0
          %s197 = smul.addr %s196, 8
          %s198 = scalar_lea.vmem %s1, %s197
        $region16: #{tpu_custom_call.1} parent=11 // pred_fallthru
          _
        // Predicated region
        $region17: #{tpu_custom_call.1} parent=11 // pred_check
          %p199 = pneg %p104
        $region18: #{tpu_custom_call.1} parent=11 // pred_check_branch
          %201 = sbr.rel (%p199) target = $region20
        $region19: #{tpu_custom_call.1} parent=11 // pred_region
          %p202 = scmp.lt.s32.totalorder %s24, 0
          %s203 = scalar_select %p202, %s24, 0
          %s204 = scalar_lea.vmem %s2, %s203
        $region20: #{tpu_custom_call.1} parent=11 // pred_fallthru
          _
        // Predicated region
        $region21: #{tpu_custom_call.1} parent=11 // pred_check
          %p205 = pneg %p130
        $region22: #{tpu_custom_call.1} parent=11 // pred_check_branch
          %207 = sbr.rel (%p205) target = $region24
        $region23: #{tpu_custom_call.1} parent=11 // pred_region
          %s208 = smul.u32 8, %s24
          %p209 = scmp.lt.s32.totalorder %s208, 7
          %s210 = scalar_select %p209, %s208, 7
          %s211 = smul.addr %s210, 8
          %s212 = scalar_lea.vmem %s3, %s211
          %s213 = smul.u32 8, %s24
        $region24: #{tpu_custom_call.1} parent=11 // pred_fallthru
          _
        // Predicated region
        $region25: #{tpu_custom_call.1} parent=11 // pred_check
          %p214 = pneg %p151
        $region26: #{tpu_custom_call.1} parent=11 // pred_check_branch
          %216 = sbr.rel (%p214) target = $region28
        $region27: #{tpu_custom_call.1} parent=11 // pred_region
          _
        $region28: #{tpu_custom_call.1} parent=11 // pred_fallthru
          _
      $region12: #{tpu_custom_call.1} parent=5 // pred_fallthru
        _
      %p217 = scmp.lt.s32.totalorder %s14, 2
      // Predicated region
      $region29: #{tpu_custom_call.1} parent=5 // pred_check
        %p218 = pneg %p217
      $region30: #{tpu_custom_call.1} parent=5 // pred_check_branch
        %220 = sbr.rel (%p218) target = $region32
      $region31: #{tpu_custom_call.1} parent=5 // pred_region
        // Predicated region
        $region33: #{tpu_custom_call.1} parent=31 // pred_check
          %p221 = pneg %p46
        $region34: #{tpu_custom_call.1} parent=31 // pred_check_branch
          %223 = sbr.rel (%p221) target = $region36
        $region35: #{tpu_custom_call.1} parent=31 // pred_region
          %p224 = scmp.lt.s32.totalorder %s21, 1
          %s225 = scalar_select %p224, %s21, 1
          %s226 = smul.addr %s225, 8
          %s227 = scalar_lea.vmem %s0, %s226
        $region36: #{tpu_custom_call.1} parent=31 // pred_fallthru
          _
      $region32: #{tpu_custom_call.1} parent=5 // pred_fallthru
        _
      %p228 = scmp.le.s32.totalorder 1, %s14
      %p229 = scmp.lt.s32.totalorder %s14, 3
      %p230 = pnand %p228, %p229
      %p231 = pneg %p230
      // Predicated region
      $region37: #{tpu_custom_call.1} parent=5 // pred_check
        _
      $region38: #{tpu_custom_call.1} parent=5 // pred_check_branch
        %233 = sbr.rel (%p230) target = $region40
      $region39: #{tpu_custom_call.1} parent=5 // pred_region
        %s234 = ssub.s32 %s14, 1
        %p235 = scmp.lt.s32.totalorder %s23, 1
        %s236 = scalar_select %p235, %s23, 1
        %s237 = smul.addr %s236, 8
        %s238 = scalar_lea.vmem %s0, %s237
        %p239 = pneg %p52
        %p240 = pneg %p49
        %p241 = scmp.lt.s32.totalorder %s24, 0
        %s242 = scalar_select %p241, %s24, 0
        %s243 = smul.addr %s242, 8
        %s244 = scalar_lea.vmem %s1, %s243
        %p245 = pneg %p78
        %p246 = pneg %p75
        %p247 = scmp.lt.s32.totalorder %s24, 0
        %s248 = scalar_select %p247, %s24, 0
        %s249 = scalar_lea.vmem %s2, %s248
        %p250 = pneg %p104
        %p251 = pneg %p101
        %s252 = smul.u32 8, %s24
        %p253 = scmp.lt.s32.totalorder %s252, 7
        %s254 = scalar_select %p253, %s252, 7
        %s255 = smul.addr %s254, 8
        %s256 = scalar_lea.vmem %s3, %s255
        %p257 = pneg %p130
        %p258 = pneg %p127
        %p259 = pneg %p151
        %p260 = pneg %p148
        %p261 = pneg %p177
        %p262 = pneg %p174
        %s263 = sand.u32 %s164, 1
        %s264 = scalar_lea.sflag [#allocation3], %s263
        %s265 = sand.u32 %s164, 1
        %s266 = smul.addr %s265, 8
        %s267 = scalar_lea.vmem [#allocation2], %s266
        %p268 = scmp.lt.s32.totalorder %s23, 1
        %s269 = scalar_select %p268, %s23, 1
        %s270 = smul.addr %s269, 8
        %s271 = scalar_lea.vmem %s0, %s270
        %p272 = scmp.lt.s32.totalorder %s24, 0
        %s273 = scalar_select %p272, %s24, 0
        %s274 = smul.addr %s273, 8
        %s275 = scalar_lea.vmem %s1, %s274
        %p276 = scmp.lt.s32.totalorder %s24, 0
        %s277 = scalar_select %p276, %s24, 0
        %s278 = scalar_lea.vmem %s2, %s277
        %s279 = smul.u32 8, %s24
        %p280 = scmp.lt.s32.totalorder %s279, 7
        %s281 = scalar_select %p280, %s279, 7
        %s282 = smul.addr %s281, 8
        %s283 = scalar_lea.vmem %s3, %s282
        %s284 = smul.u32 8, %s24
        %p285 = scmp.eq.s32.totalorder %s24, 0
        // Predicated region
        $region41: #{tpu_custom_call.1} parent=39 // pred_check
          %p286 = pneg %p285
        $region42: #{tpu_custom_call.1} parent=39 // pred_check_branch
          %288 = sbr.rel (%p286) target = $region44
        $region43: #{tpu_custom_call.1} parent=39 // pred_region
          %vm289 = vcmask 261120
          %290 = vst.msk [vmem:[%s267] sm:$0xff] %vm289, 0.0
        $region44: #{tpu_custom_call.1} parent=39 // pred_fallthru
          _
        %v291 = vld [vmem:[%s271] sm:$0xff]
        %v292 = vld [vmem:[%s275] sm:$0xff]
        %v293 = vld [vmem:[%s275 + $0x8] sm:$0xff]
        %v294 = vld [vmem:[%s275 + $0x10] sm:$0xff]
        %v295 = vld [vmem:[%s275 + $0x18] sm:$0xff]
        %v296 = vld [vmem:[%s278] sm:$0x1]
        %v298 = vlaneseq
        %v299 = vshrl.u32 %v298, 7
        %v300 = vsub.s32 0, %v299
        %v301 = vrot.slane %v296, %v300
        %vm303 = vcmask 261120
        %v305 = vsel %vm303, %v291, 0
        %307 = vmatprep.subr.mxu0 0.0
        %308 = vmatpush1.msra.mxu0 %v292
        %309 = vmatprep.subr.mxu0 0.0
        %310 = vmatpush1.msra.mxu0 %v293
        %311 = vmatprep.subr.mxu0 0.0
        %312 = vmatpush1.msra.mxu0 %v294
        %313 = vmatprep.subr.mxu0 0.0
        %314 = vmatpush1.msra.mxu0 %v295
        %315 = vmatprep.subr.mxu0 0.0
        %316 = vmatpush1.msra.mxu0 0.0
        %317 = vmatprep.subr.mxu0 0.0
        %318 = vmatpush1.msra.mxu0 0.0
        %319 = vmatprep.subr.mxu0 0.0
        %320 = vmatpush1.msra.mxu0 0.0
        %321 = vmatprep.subr.mxu0 0.0
        %322 = vmatpush1.msra.mxu0 0.0
        %323 = vmatprep.subr.mxu0 0.0
        %324 = vmatpush1.msra.mxu0 0.0
        %325 = vmatprep.subr.mxu0 0.0
        %326 = vmatpush1.msra.mxu0 0.0
        %327 = vmatprep.subr.mxu0 0.0
        %328 = vmatpush1.msra.mxu0 0.0
        %329 = vmatprep.subr.mxu0 0.0
        %330 = vmatpush1.msra.mxu0 0.0
        %331 = vmatprep.subr.mxu0 0.0
        %332 = vmatpush1.msra.mxu0 0.0
        %333 = vmatprep.subr.mxu0 0.0
        %334 = vmatpush1.msra.mxu0 0.0
        %335 = vmatprep.subr.mxu0 0.0
        %336 = vmatpush1.msra.mxu0 0.0
        %337 = vmatprep.subr.mxu0 0.0
        %338 = vmatpush1.msra.mxu0 0.0
        %339 = vmatprep.subr.mxu0 0.0
        %340 = vmatpush1.msra.mxu0 0.0
        %341 = vmatprep.subr.mxu0 0.0
        %342 = vmatpush1.msra.mxu0 0.0
        %343 = vmatprep.subr.mxu0 0.0
        %344 = vmatpush1.msra.mxu0 0.0
        %345 = vmatprep.subr.mxu0 0.0
        %346 = vmatpush1.msra.mxu0 0.0
        %347 = vmatprep.subr.mxu0 0.0
        %348 = vmatpush1.msra.mxu0 0.0
        %349 = vmatprep.subr.mxu0 0.0
        %350 = vmatpush1.msra.mxu0 0.0
        %351 = vmatprep.subr.mxu0 0.0
        %352 = vmatpush1.msra.mxu0 0.0
        %353 = vmatprep.subr.mxu0 0.0
        %354 = vmatpush1.msra.mxu0 0.0
        %355 = vmatprep.subr.mxu0 0.0
        %356 = vmatpush1.msra.mxu0 0.0
        %357 = vmatprep.subr.mxu0 0.0
        %358 = vmatpush1.msra.mxu0 0.0
        %359 = vmatprep.subr.mxu0 0.0
        %360 = vmatpush1.msra.mxu0 0.0
        %361 = vmatprep.subr.mxu0 0.0
        %362 = vmatpush1.msra.mxu0 0.0
        %363 = vmatprep.subr.mxu0 0.0
        %364 = vmatpush1.msra.mxu0 0.0
        %365 = vmatprep.subr.mxu0 0.0
        %366 = vmatpush1.msra.mxu0 0.0
        %367 = vmatprep.subr.mxu0 0.0
        %368 = vmatpush1.msra.mxu0 0.0
        %369 = vmatprep.subr.mxu0 0.0
        %370 = vmatpush1.msra.mxu0 0.0
        %371 = vmatprep.mubr.f32.mxu0 0.0
        %372 = vmatmul.mubr.f32.gmra.mrb[0].mxu0 %v305
        %v373 = vpop.f32.mrb[0].mxu0
        %v374 = vadd.f32 %v301, %v373
        %v375 = vpop.f32.mrb[0].mxu0
        %376 = vdwg.mxu0
        %v377 = vmul.f32 %v374, 0.5
        %v378 = vmul.f32 %v374, 0.70710677
        %v379 = verf.f32.pop %v378
        %v380 = vadd.f32 %v379, 1.0
        %v381 = vmul.f32 %v377, %v380
        %v382 = vld [vmem:[%s267] sm:$0xff]
        %v383 = vld [vmem:[%s283] sm:$0xff]
        %v384 = vld [vmem:[%s283 + $0x8] sm:$0xff]
        %v385 = vld [vmem:[%s283 + $0x10] sm:$0xff]
        %v386 = vld [vmem:[%s283 + $0x18] sm:$0xff]
        %v387 = vld [vmem:[%s283 + $0x20] sm:$0xff]
        %v388 = vld [vmem:[%s283 + $0x28] sm:$0xff]
        %v389 = vld [vmem:[%s283 + $0x30] sm:$0xff]
        %v390 = vld [vmem:[%s283 + $0x38] sm:$0xff]
        %vm391 = vcmask 523264
        %v393 = vsel %vm391, %v381, 0
        %395 = vmatprep.subr.mxu0 0.0
        %396 = vmatpush1.msra.mxu0 %v383
        %397 = vmatprep.subr.mxu0 0.0
        %398 = vmatpush1.msra.mxu0 %v384
        %399 = vmatprep.subr.mxu0 0.0
        %400 = vmatpush1.msra.mxu0 %v385
        %401 = vmatprep.subr.mxu0 0.0
        %402 = vmatpush1.msra.mxu0 %v386
        %403 = vmatprep.subr.mxu0 0.0
        %404 = vmatpush1.msra.mxu0 %v387
        %405 = vmatprep.subr.mxu0 0.0
        %406 = vmatpush1.msra.mxu0 %v388
        %407 = vmatprep.subr.mxu0 0.0
        %408 = vmatpush1.msra.mxu0 %v389
        %409 = vmatprep.subr.mxu0 0.0
        %410 = vmatpush1.msra.mxu0 %v390
        %411 = vmatprep.subr.mxu0 0.0
        %412 = vmatpush1.msra.mxu0 0.0
        %413 = vmatprep.subr.mxu0 0.0
        %414 = vmatpush1.msra.mxu0 0.0
        %415 = vmatprep.subr.mxu0 0.0
        %416 = vmatpush1.msra.mxu0 0.0
        %417 = vmatprep.subr.mxu0 0.0
        %418 = vmatpush1.msra.mxu0 0.0
        %419 = vmatprep.subr.mxu0 0.0
        %420 = vmatpush1.msra.mxu0 0.0
        %421 = vmatprep.subr.mxu0 0.0
        %422 = vmatpush1.msra.mxu0 0.0
        %423 = vmatprep.subr.mxu0 0.0
        %424 = vmatpush1.msra.mxu0 0.0
        %425 = vmatprep.subr.mxu0 0.0
        %426 = vmatpush1.msra.mxu0 0.0
        %427 = vmatprep.subr.mxu0 0.0
        %428 = vmatpush1.msra.mxu0 0.0
        %429 = vmatprep.subr.mxu0 0.0
        %430 = vmatpush1.msra.mxu0 0.0
        %431 = vmatprep.subr.mxu0 0.0
        %432 = vmatpush1.msra.mxu0 0.0
        %433 = vmatprep.subr.mxu0 0.0
        %434 = vmatpush1.msra.mxu0 0.0
        %435 = vmatprep.subr.mxu0 0.0
        %436 = vmatpush1.msra.mxu0 0.0
        %437 = vmatprep.subr.mxu0 0.0
        %438 = vmatpush1.msra.mxu0 0.0
        %439 = vmatprep.subr.mxu0 0.0
        %440 = vmatpush1.msra.mxu0 0.0
        %441 = vmatprep.subr.mxu0 0.0
        %442 = vmatpush1.msra.mxu0 0.0
        %443 = vmatprep.subr.mxu0 0.0
        %444 = vmatpush1.msra.mxu0 0.0
        %445 = vmatprep.subr.mxu0 0.0
        %446 = vmatpush1.msra.mxu0 0.0
        %447 = vmatprep.subr.mxu0 0.0
        %448 = vmatpush1.msra.mxu0 0.0
        %449 = vmatprep.subr.mxu0 0.0
        %450 = vmatpush1.msra.mxu0 0.0
        %451 = vmatprep.subr.mxu0 0.0
        %452 = vmatpush1.msra.mxu0 0.0
        %453 = vmatprep.subr.mxu0 0.0
        %454 = vmatpush1.msra.mxu0 0.0
        %455 = vmatprep.subr.mxu0 0.0
        %456 = vmatpush1.msra.mxu0 0.0
        %457 = vmatprep.subr.mxu0 0.0
        %458 = vmatpush1.msra.mxu0 0.0
        %459 = vmatprep.mubr.f32.mxu0 0.0
        %460 = vmatmul.mubr.f32.gmra.mrb[0].mxu0 %v393
        %v461 = vpop.f32.mrb[0].mxu0
        %v462 = vadd.f32 0.0, %v461
        %v463 = vpop.f32.mrb[0].mxu0
        %464 = vdwg.mxu0
        %v465 = vadd.f32 %v382, %v462
        %466 = vst.msk [vmem:[%s267] sm:$0xff] %vm303, %v465
        // Predicated region
        $region45: #{tpu_custom_call.1} parent=39 // pred_check
          %p467 = pneg %p285
        $region46: #{tpu_custom_call.1} parent=39 // pred_check_branch
          %469 = sbr.rel (%p467) target = $region48
        $region47: #{tpu_custom_call.1} parent=39 // pred_region
          %v470 = vld [vmem:[%s267] sm:$0xff]
          %v471 = vld [vmem:[%s4] sm:$0x1]
          %v473 = vlaneseq
          %v474 = vshrl.u32 %v473, 7
          %v475 = vsub.s32 0, %v474
          %v476 = vrot.slane %v471, %v475
          %v478 = vadd.f32 %v470, %v476
          %479 = vst.msk [vmem:[%s267] sm:$0xff] %vm303, %v478
        $region48: #{tpu_custom_call.1} parent=39 // pred_fallthru
          _
        %s480 = sand.u32 %s164, 1
        %s481 = scalar_lea.sflag [#allocation3], %s480
        %s482 = sand.u32 %s164, 1
        %s483 = smul.addr %s482, 8
        %s484 = scalar_lea.vmem [#allocation2], %s483
        // Predicated region
        $region49: #{tpu_custom_call.1} parent=39 // pred_check
          %p485 = pneg %p174
        $region50: #{tpu_custom_call.1} parent=39 // pred_check_branch
          %487 = sbr.rel (%p485) target = $region52
        $region51: #{tpu_custom_call.1} parent=39 // pred_region
          %s489 = ssub.s32 128, 128
          %490 = vsyncadd %s481, %s489
          %s491 = smul.addr %s23, 128
          %s492 = scalar_lea.hbm %s5, %s491
          %s494 = sshll.u32 %s484, 4
          %s495 = int_to_ptr.vmem [resolvable:$true] %s494
          %497 = dma.vmem_to_hbm [thread:$0]  %s495, 128, %s492, %s481
        $region52: #{tpu_custom_call.1} parent=39 // pred_fallthru
          _
      $region40: #{tpu_custom_call.1} parent=5 // pred_fallthru
        _
      %p498 = scmp.le.s32.totalorder 2, %s14
      // Predicated region
      $region53: #{tpu_custom_call.1} parent=5 // pred_check
        %p499 = pneg %p498
      $region54: #{tpu_custom_call.1} parent=5 // pred_check_branch
        %501 = sbr.rel (%p499) target = $region56
      $region55: #{tpu_custom_call.1} parent=5 // pred_region
        %s502 = ssub.s32 %s14, 2
        // Predicated region
        $region57: #{tpu_custom_call.1} parent=55 // pred_check
          %p503 = pneg %p180
        $region58: #{tpu_custom_call.1} parent=55 // pred_check_branch
          %505 = sbr.rel (%p503) target = $region60
        $region59: #{tpu_custom_call.1} parent=55 // pred_region
          %s506 = sand.u32 %s165, 1
          %s507 = scalar_lea.sflag [#allocation3], %s506
          %s508 = sand.u32 %s165, 1
          %s509 = smul.addr %s508, 8
          %s510 = scalar_lea.vmem [#allocation2], %s509
          %511 = dma.done %s507, 128
        $region60: #{tpu_custom_call.1} parent=55 // pred_fallthru
          _
      $region56: #{tpu_custom_call.1} parent=5 // pred_fallthru
        _
    $region6: #{tpu_custom_call.1} parent=1 // loop_footer
      %s18 = sadd.s32 1, %s14
    $region7: #{tpu_custom_call.1} parent=1 // loop_footer_branch
      %13 = sbr.rel target = $region3
    $region8: #{tpu_custom_call.1} parent=1 // loop_exit
      _
    %512 = vsyncpa [#allocation3], 1
    %s513 = scalar_lea.sflag [#allocation3], 1
    %514 = vsyncpa %s513, 1

</llo_original>
